<compile_context>
chip_gen: v7x
topology: tpu7x:2x2x1
jax: 0.10.0
libtpu: 0.0.40
codegen_flags: <defaults>
</compile_context>

<pallas_src>
import jax
import jax.numpy as jnp
from jax.experimental import pallas as pl
from jax.experimental.pallas import tpu as pltpu


def _weight_mul_kernel(x_ref, w_ref, o_ref):
    # x_ref: (Bt, dim, num_points), w_ref: (dim, num_points)  -> broadcast multiply
    o_ref[...] = x_ref[...] * w_ref[...]


def weight_forward(x, learnable_param, *, target_block_bytes=4 * 1024 * 1024):
    """x: (B, dim, num_points); learnable_param: (dim, num_points)."""
    B, dim, num_points = x.shape
    assert learnable_param.shape == (dim, num_points)

    itemsize = jnp.dtype(x.dtype).itemsize
    bytes_per_slice = dim * num_points * itemsize

    # Batch-tile size: pack as many batch slices as fit in ~target_block_bytes,
    # but never more than B. Guarantees at least 1 slice per block.
    bt = max(1, min(B, target_block_bytes // max(1, bytes_per_slice)))
    grid = (pl.cdiv(B, bt),)

    block_bytes = bt * bytes_per_slice
    param_bytes = dim * num_points * jnp.dtype(learnable_param.dtype).itemsize
    # 2 double-buffered input blocks + 2 double-buffered output blocks + resident
    # param + small margin. With a 4 MiB block target this stays <= ~20 MiB,
    # comfortably inside every generation's VMEM (incl. v7x's 64 MiB).
    vmem_limit = 4 * block_bytes + param_bytes + (4 << 20)

    return pl.pallas_call(
        _weight_mul_kernel,
        out_shape=jax.ShapeDtypeStruct((B, dim, num_points), x.dtype),
        grid_spec=pl.GridSpec(
            grid=grid,
            in_specs=[
                pl.BlockSpec((bt, dim, num_points), lambda b: (b, 0, 0)),
                # Constant index_map: param stays resident in VMEM across steps.
                pl.BlockSpec((dim, num_points), lambda b: (0, 0)),
            ],
            out_specs=pl.BlockSpec((bt, dim, num_points), lambda b: (b, 0, 0)),
        ),
        compiler_params=pltpu.CompilerParams(
            dimension_semantics=("parallel",),
            vmem_limit_bytes=int(vmem_limit),
        ),
    )(x, learnable_param)


if __name__ == "__main__":
    # Module config: dim=8, num_points=128 (last dim is a multiple of 128 ->
    # lane-dense stores). Small batch for the smoke test.
    dim, num_points, batch = 8, 128, 4

    key = jax.random.PRNGKey(0)
    k_param, k_x = jax.random.split(key)

    # nn.init.normal_(param, mean=0, std=0.01)
    learnable_param = 0.01 * jax.random.normal(
        k_param, (dim, num_points), dtype=jnp.float32
    )
    x = jax.random.normal(k_x, (batch, dim, num_points), dtype=jnp.float32)

    out = weight_forward(x, learnable_param)
    jax.block_until_ready(out)

    # Correctness check against plain-JAX reference (same broadcast as PyTorch).
    ref = x * learnable_param
    assert out.shape == x.shape
    assert jnp.allclose(out, ref, atol=1e-6, rtol=1e-6)

    print("KERNEL_OK")
</pallas_src>

<mosaic_0001>
module attributes {stable_mosaic.version = 11 : i64} {
  func.func @_weight_mul_kernel(%arg0: i32, %arg1: memref<4x8x128xf32, #tpu.memory_space<vmem>>, %arg2: memref<8x128xf32, #tpu.memory_space<vmem>>, %arg3: memref<4x8x128xf32, #tpu.memory_space<vmem>>) attributes {dimension_semantics = [#tpu.dimension_semantics<parallel>], iteration_bounds = array<i64: 1>, scalar_prefetch = 0 : i64, scratch_operands = 0 : i64, tpu.core_type = #tpu.core_type<tc>, window_params = [{transform_indices = @transform_0, window_bounds = array<i64: 4, 8, 128>}, {pipeline_mode = #tpu.pipeline_mode<synchronous>, transform_indices = @transform_1, window_bounds = array<i64: 8, 128>}, {transform_indices = @transform_2, window_bounds = array<i64: 4, 8, 128>}]} {
    %c0 = arith.constant 0 : index
    %c0_0 = arith.constant 0 : index
    %c0_1 = arith.constant 0 : index
    %0 = vector.load %arg1[%c0, %c0_0, %c0_1] : memref<4x8x128xf32, #tpu.memory_space<vmem>>, vector<4x8x128xf32>
    %c0_2 = arith.constant 0 : index
    %c0_3 = arith.constant 0 : index
    %1 = vector.load %arg2[%c0_2, %c0_3] : memref<8x128xf32, #tpu.memory_space<vmem>>, vector<8x128xf32>
    %2 = vector.shape_cast %1 : vector<8x128xf32> to vector<1x8x128xf32>
    %3 = vector.broadcast %2 : vector<1x8x128xf32> to vector<4x8x128xf32>
    %4 = arith.mulf %0, %3 : vector<4x8x128xf32>
    %c0_4 = arith.constant 0 : index
    %c0_5 = arith.constant 0 : index
    %c0_6 = arith.constant 0 : index
    %5 = vector.load %arg3[%c0_4, %c0_5, %c0_6] : memref<4x8x128xf32, #tpu.memory_space<vmem>>, vector<4x8x128xf32>
    tpu.vector_store %arg3[%c0_4, %c0_5, %c0_6], %4 {strides = array<i32>} : memref<4x8x128xf32, #tpu.memory_space<vmem>>, vector<4x8x128xf32>,
    return
  }
  func.func @transform_0(%arg0: i32) -> (i32, i32, i32) {
    %c0_i32 = arith.constant 0 : i32
    %c0_i32_0 = arith.constant 0 : i32
    %c0_i32_1 = arith.constant 0 : i32
    return %arg0, %c0_i32, %c0_i32_0 : i32, i32, i32
  }
  func.func @transform_1(%arg0: i32) -> (i32, i32) {
    %c0_i32 = arith.constant 0 : i32
    %c0_i32_0 = arith.constant 0 : i32
    %c0_i32_1 = arith.constant 0 : i32
    return %c0_i32, %c0_i32_0 : i32, i32
  }
  func.func @transform_2(%arg0: i32) -> (i32, i32, i32) {
    %c0_i32 = arith.constant 0 : i32
    %c0_i32_0 = arith.constant 0 : i32
    %c0_i32_1 = arith.constant 0 : i32
    return %arg0, %c0_i32, %c0_i32_0 : i32, i32, i32
  }
}

</mosaic_0001>

<llo_original>
// kernel: tpu_custom_call.1
$region0: #{tpu_custom_call.1}
  #allocation0 [shape = 'u32[]', space=smem, size = 0x4, offset = 0x4, fixed_abs, tag = 'smem constant byte address 0x4 - core index']
  #allocation1 [shape = 'u32[144,128]{1,0:T(1,128)}', space=vmem, size = 0x12000, scoped, tag = 'internal scratch']
  %s0 = inlined_call_operand.hbm [shape: f32[4,8,128], index: 0, kind: input, shape index: {}]
  %s1 = inlined_call_operand.hbm [shape: f32[8,128], index: 1, kind: input, shape index: {}]
  %s2 = inlined_call_operand.hbm [shape: f32[4,8,128], index: 2, kind: output, shape index: {}]
  %s3 = sld [smem:[#allocation0]]
  $region26: #{tpu_custom_call.1} parent=0
    _
  %s5 = ssub.s32 1, %s3
  %s6 = scalar_select 0, %s5, %s3
  $region1: #{tpu_custom_call.1} parent=0
    #allocation2 [shape = 'u8[16384]{0}', space=vmem, size = 0x4000, scoped, tag = 'input window, operand 0, single buffered']
    #allocation3 [shape = 's32[1]{0}', space=sflag, size = 0x4, scoped, tag = 'scoped memory for tpu_custom_call.1']
    #allocation4 [shape = 's32[1]{0}', space=sflag, size = 0x4, scoped, tag = 'scoped memory for tpu_custom_call.1']
    #allocation5 [shape = 'u8[4096]{0}', space=vmem, size = 0x1000, scoped, tag = 'input window, operand 1, single buffered']
    #allocation6 [shape = 's32[1]{0}', space=sflag, size = 0x4, scoped, tag = 'scoped memory for tpu_custom_call.1']
    #allocation7 [shape = 'u8[16384]{0}', space=vmem, size = 0x4000, scoped, tag = 'output window, operand 0, single buffered']
    %7 = vsyncpa [#allocation3], 0
    %8 = vsyncpa [#allocation6], 0
    %9 = vsyncpa [#allocation4], 0
    // Predicated region
    $region2: #{tpu_custom_call.1} parent=1 // pred_check
      _
    $region3: #{tpu_custom_call.1} parent=1 // pred_check_branch
      %11 = sbr.rel (0) target = $region5
    $region4: #{tpu_custom_call.1} parent=1 // pred_region
      %s13 = ssub.s32 512, 512
      %14 = vsyncadd [#allocation3], %s13
      %s15 = sshll.u32 [#allocation2], 4
      %s16 = int_to_ptr.vmem [resolvable:$true] %s15
      %21 = dma.hbm_to_vmem [thread:$0]  %s0, 512, %s16, [#allocation3], 128, 128, 8
    $region5: #{tpu_custom_call.1} parent=1 // pred_fallthru
      _
    // Predicated region
    $region6: #{tpu_custom_call.1} parent=1 // pred_check
      _
    $region7: #{tpu_custom_call.1} parent=1 // pred_check_branch
      %23 = sbr.rel (0) target = $region9
    $region8: #{tpu_custom_call.1} parent=1 // pred_region
      %s25 = ssub.s32 128, 128
      %26 = vsyncadd [#allocation6], %s25
      %s28 = sshll.u32 [#allocation5], 4
      %s29 = int_to_ptr.vmem [resolvable:$true] %s28
      %31 = dma.hbm_to_vmem [thread:$0]  %s1, 128, %s29, [#allocation6]
    $region9: #{tpu_custom_call.1} parent=1 // pred_fallthru
      _
    // Predicated region
    $region10: #{tpu_custom_call.1} parent=1 // pred_check
      _
    $region11: #{tpu_custom_call.1} parent=1 // pred_check_branch
      %33 = sbr.rel (0) target = $region13
    $region12: #{tpu_custom_call.1} parent=1 // pred_region
      %34 = dma.done [#allocation3], 512
    $region13: #{tpu_custom_call.1} parent=1 // pred_fallthru
      _
    // Predicated region
    $region14: #{tpu_custom_call.1} parent=1 // pred_check
      _
    $region15: #{tpu_custom_call.1} parent=1 // pred_check_branch
      %36 = sbr.rel (0) target = $region17
    $region16: #{tpu_custom_call.1} parent=1 // pred_region
      %37 = dma.done [#allocation6], 128
    $region17: #{tpu_custom_call.1} parent=1 // pred_fallthru
      _
    %v38 = vld [vmem:[#allocation2] sm:$0xff]
    %v39 = vld [vmem:[#allocation2 + $0x8] sm:$0xff]
    %v40 = vld [vmem:[#allocation2 + $0x10] sm:$0xff]
    %v41 = vld [vmem:[#allocation2 + $0x18] sm:$0xff]
    %v42 = vld [vmem:[#allocation5] sm:$0xff]
    %v43 = vmul.f32 %v38, %v42
    %v44 = vmul.f32 %v39, %v42
    %v45 = vmul.f32 %v40, %v42
    %v46 = vmul.f32 %v41, %v42
    %47 = vst [vmem:[#allocation7] sm:$0xff] %v43
    %48 = vst [vmem:[#allocation7 + $0x8] sm:$0xff] %v44
    %49 = vst [vmem:[#allocation7 + $0x10] sm:$0xff] %v45
    %50 = vst [vmem:[#allocation7 + $0x18] sm:$0xff] %v46
    // Predicated region
    $region18: #{tpu_custom_call.1} parent=1 // pred_check
      _
    $region19: #{tpu_custom_call.1} parent=1 // pred_check_branch
      %52 = sbr.rel (0) target = $region21
    $region20: #{tpu_custom_call.1} parent=1 // pred_region
      %s54 = ssub.s32 512, 512
      %55 = vsyncadd [#allocation4], %s54
      %s56 = sshll.u32 [#allocation7], 4
      %s57 = int_to_ptr.vmem [resolvable:$true] %s56
      %62 = dma.vmem_to_hbm [thread:$0]  %s57, 512, %s2, [#allocation4], 128, 128, 8
    $region21: #{tpu_custom_call.1} parent=1 // pred_fallthru
      _
    // Predicated region
    $region22: #{tpu_custom_call.1} parent=1 // pred_check
      _
    $region23: #{tpu_custom_call.1} parent=1 // pred_check_branch
      %64 = sbr.rel (0) target = $region25
    $region24: #{tpu_custom_call.1} parent=1 // pred_region
      %65 = dma.done [#allocation4], 512
    $region25: #{tpu_custom_call.1} parent=1 // pred_fallthru
      _
    %66 = vsyncpa [#allocation3], 1
    %67 = vsyncpa [#allocation6], 1
    %68 = vsyncpa [#allocation4], 1

</llo_original>
